<compile_context>
chip_gen: v7x
topology: tpu7x:2x2x1
jax: 0.10.0
libtpu: 0.0.40
codegen_flags: <defaults>
</compile_context>

<pallas_src>
import functools

import numpy as np
import jax
import jax.numpy as jnp
from jax import lax
from jax.experimental import pallas as pl
from jax.experimental.pallas import tpu as pltpu

IN_C = 4
OUT_C = 4
STRIDE = 1
EXPAND = 4
HID = int(round(IN_C * EXPAND))   # 16
EPS = 1e-5

# 3x3 taps, row-major (ky, kx) order, matching the folded weight layout.
TAPS = ((-1, -1), (-1, 0), (-1, 1),
        (0, -1), (0, 0), (0, 1),
        (1, -1), (1, 0), (1, 1))
CENTER = 4   # index of the (0, 0) tap in TAPS

# Packed-parameter column layout (single (HID, PARAM_COLS) VMEM input).
W1_COL = 0                 # cols [0, IN_C)           : expand weight  (HID, IN_C)
B1_COL = IN_C              # col  IN_C                : expand bias    (HID,)
B2_COL = IN_C + 1          # col  IN_C+1              : depthwise bias (HID,)
W3_COL = IN_C + 2          # cols [IN_C+2, IN_C+2+HID): project weight (OUT_C, HID)
B3_COL = W3_COL + HID      # col  IN_C+2+HID          : project bias   (OUT_C,)
PARAM_COLS = 32


# ------------------------------ Pallas kernel --------------------------------

def _fused_kernel(x_ref, params_ref, wmask_ref, o_ref, *, width, lane_hw):
    """Fused InvertedResidual block on a (C, lane_hw) tile (batch on lanes)."""
    x = x_ref[0]                                           # (IN_C, lane_hw)

    # Tiny packed parameters (static slices of one VMEM tile, loaded once).
    w1 = params_ref[:, W1_COL:W1_COL + IN_C]               # (HID, IN_C)
    b1 = params_ref[:, B1_COL:B1_COL + 1]                  # (HID, 1)
    b2 = params_ref[:, B2_COL:B2_COL + 1]                  # (HID, 1)
    w3 = params_ref[0:OUT_C, W3_COL:W3_COL + HID]          # (OUT_C, HID)
    b3 = params_ref[0:OUT_C, B3_COL:B3_COL + 1]            # (OUT_C, 1)

    # ---- 1x1 expand + BN + ReLU6 : one MXU push, N = lane_hw on lanes ------
    h1 = jnp.dot(w1, x, preferred_element_type=jnp.float32) + b1
    h1 = jnp.clip(h1, 0.0, 6.0)                            # (HID, lane_hw)

    # ---- 3x3 depthwise (stride 1, pad 1) + BN + ReLU6 ----------------------
    # wmask[k] = depthwise_weight[:, k] (sublanes) * tap-validity mask (lanes),
    # precomputed in the wrapper, so each tap is one XLU roll + one VPU MAC.
    # The masks zero every lane a roll pulls across an image/batch boundary.
    acc = wmask_ref[CENTER] * h1                           # center tap: no roll
    for k, (dy, dx) in enumerate(TAPS):
        s = dy * width + dx
        if s == 0:
            continue
        # pltpu.roll follows jnp.roll semantics: out[:, i] = x[:, (i-shift)%n];
        # we need shifted[:, i] = h1[:, (i+s)%n]  ->  shift = -s (mod n).
        shifted = pltpu.roll(h1, (-s) % lane_hw, axis=1)
        acc = acc + wmask_ref[k] * shifted
    h2 = jnp.clip(acc + b2, 0.0, 6.0)                      # (HID, lane_hw)

    # ---- 1x1 project + BN : second MXU matmul, then residual add -----------
    y = jnp.dot(w3, h2, preferred_element_type=jnp.float32) + b3
    o_ref[0] = y + x


# ------------------------------ Wrapper --------------------------------------

@functools.lru_cache(maxsize=None)
def _tap_masks_np(h, w):
    """(9, H*W) float32 0/1 validity of each 3x3 tap at each flat position."""
    yy = np.repeat(np.arange(h), w)
    xx = np.tile(np.arange(w), h)
    rows = []
    for dy, dx in TAPS:
        ok = ((xx + dx >= 0) & (xx + dx < w) & (yy + dy >= 0) & (yy + dy < h))
        rows.append(ok.astype(np.float32))
    return np.stack(rows)


def _pack_params(w1, b1, b2, w3, b3):
    p = jnp.zeros((HID, PARAM_COLS), jnp.float32)
    p = p.at[:, W1_COL:W1_COL + IN_C].set(w1)
    p = p.at[:, B1_COL].set(b1[:, 0])
    p = p.at[:, B2_COL].set(b2[:, 0])
    p = p.at[0:OUT_C, W3_COL:W3_COL + HID].set(w3)
    p = p.at[0:OUT_C, B3_COL].set(b3[:, 0])
    return p


def inverted_residual(x_nchw, folded):
    """x_nchw: (N, Cin, H, W) float32 -> (N, Cout, H, W) float32 (stride=1)."""
    w1, b1, wdw, b2, w3, b3 = folded
    n, c, h, w = x_nchw.shape
    hw = h * w

    # v7x has 2 TensorCores: split the batch across a 2-wide 'parallel' grid
    # axis (one half per TC).  v5e / v6e: single grid step, whole batch on
    # lanes (per-step overhead dominates at these shapes).
    kind = jax.devices()[0].device_kind.lower()
    n_chunks = 2 if (("v7" in kind or "7x" in kind) and n >= 2 and n % 2 == 0) else 1
    per = n // n_chunks
    lane_hw = per * hw          # lanes per grid step (multiple of 128 for HW=256)
    # TODO(synk): at real MobileNet shapes (large N*HW) add a lane-tiling grid
    # axis sized against pltpu.get_tpu_info().vmem_capacity_bytes (v7x: 64 MiB).

    # Batch-on-lanes layout: (n_chunks, C, per*HW), per-image HW segments
    # concatenated along the lane axis.
    x = (x_nchw.astype(jnp.float32)
         .reshape(n_chunks, per, c, hw)
         .transpose(0, 2, 1, 3)
         .reshape(n_chunks, c, lane_hw))

    # Depthwise weight with the tap-validity mask folded in, tiled per image.
    masks = jnp.asarray(_tap_masks_np(h, w))                      # (9, HW)
    wmask = wdw.T[:, :, None] * masks[:, None, :]                 # (9, HID, HW)
    wmask = jnp.tile(wmask, (1, 1, per))                          # (9, HID, lane_hw)

    params = _pack_params(w1, b1, b2, w3, b3)                     # (HID, PARAM_COLS)

    kernel = functools.partial(_fused_kernel, width=w, lane_hw=lane_hw)

    out = pl.pallas_call(
        kernel,
        out_shape=jax.ShapeDtypeStruct((n_chunks, OUT_C, lane_hw), jnp.float32),
        grid=(n_chunks,),
        in_specs=[
            pl.BlockSpec((1, c, lane_hw), lambda i: (i, 0, 0)),
            pl.BlockSpec((HID, PARAM_COLS), lambda i: (0, 0)),
            pl.BlockSpec((9, HID, lane_hw), lambda i: (0, 0, 0)),
        ],
        out_specs=pl.BlockSpec((1, OUT_C, lane_hw), lambda i: (i, 0, 0)),
        compiler_params=pltpu.CompilerParams(
            dimension_semantics=("parallel",)),
    )(x, params, wmask)

    return (out.reshape(n_chunks, OUT_C, per, hw)
            .transpose(0, 2, 1, 3)
            .reshape(n, OUT_C, h, w))


# ----------------------- Parameter init & BN folding -------------------------

def init_raw_params(key):
    ks = jax.random.split(key, 16)
    w1c = jax.random.normal(ks[0], (HID, IN_C, 1, 1), jnp.float32) * 0.3
    g1 = jax.random.uniform(ks[1], (HID,), minval=0.5, maxval=1.5)
    be1 = jax.random.normal(ks[2], (HID,)) * 0.1
    m1 = jax.random.normal(ks[3], (HID,)) * 0.1
    v1 = jax.random.uniform(ks[4], (HID,), minval=0.5, maxval=1.5)

    wdwc = jax.random.normal(ks[5], (HID, 1, 3, 3), jnp.float32) * 0.3
    g2 = jax.random.uniform(ks[6], (HID,), minval=0.5, maxval=1.5)
    be2 = jax.random.normal(ks[7], (HID,)) * 0.1
    m2 = jax.random.normal(ks[8], (HID,)) * 0.1
    v2 = jax.random.uniform(ks[9], (HID,), minval=0.5, maxval=1.5)

    w3c = jax.random.normal(ks[10], (OUT_C, HID, 1, 1), jnp.float32) * 0.3
    g3 = jax.random.uniform(ks[11], (OUT_C,), minval=0.5, maxval=1.5)
    be3 = jax.random.normal(ks[12], (OUT_C,)) * 0.1
    m3 = jax.random.normal(ks[13], (OUT_C,)) * 0.1
    v3 = jax.random.uniform(ks[14], (OUT_C,), minval=0.5, maxval=1.5)
    return (w1c, g1, be1, m1, v1, wdwc, g2, be2, m2, v2, w3c, g3, be3, m3, v3)


def fold_params(p):
    (w1c, g1, be1, m1, v1, wdwc, g2, be2, m2, v2, w3c, g3, be3, m3, v3) = p
    s1 = g1 / jnp.sqrt(v1 + EPS)
    w1 = w1c[:, :, 0, 0] * s1[:, None]                            # (HID, Cin)
    b1 = (be1 - m1 * s1)[:, None]                                 # (HID, 1)

    s2 = g2 / jnp.sqrt(v2 + EPS)
    wdw = (wdwc[:, 0, :, :] * s2[:, None, None]).reshape(HID, 9)  # (HID, 9)
    b2 = (be2 - m2 * s2)[:, None]                                 # (HID, 1)

    s3 = g3 / jnp.sqrt(v3 + EPS)
    w3 = w3c[:, :, 0, 0] * s3[:, None]                            # (Cout, HID)
    b3 = (be3 - m3 * s3)[:, None]                                 # (Cout, 1)
    return w1, b1, wdw, b2, w3, b3


# ------------------------------ Reference ------------------------------------

def ref_forward(x, p):
    (w1c, g1, be1, m1, v1, wdwc, g2, be2, m2, v2, w3c, g3, be3, m3, v3) = p

    def bn(y, g, b, m, v):
        return ((y - m[None, :, None, None])
                / jnp.sqrt(v[None, :, None, None] + EPS)
                * g[None, :, None, None] + b[None, :, None, None])

    dn = ('NCHW', 'OIHW', 'NCHW')
    h = lax.conv_general_dilated(x, w1c, (1, 1), 'VALID', dimension_numbers=dn)
    h = jnp.clip(bn(h, g1, be1, m1, v1), 0.0, 6.0)
    h = lax.conv_general_dilated(h, wdwc, (STRIDE, STRIDE), ((1, 1), (1, 1)),
                                 dimension_numbers=dn, feature_group_count=HID)
    h = jnp.clip(bn(h, g2, be2, m2, v2), 0.0, 6.0)
    h = lax.conv_general_dilated(h, w3c, (1, 1), 'VALID', dimension_numbers=dn)
    h = bn(h, g3, be3, m3, v3)
    return x + h   # use_res_connect: stride==1 and in_channels==out_channels


# -------------------------------- Main ----------------------------------------

if __name__ == "__main__":
    key = jax.random.PRNGKey(0)
    k_x, k_p = jax.random.split(key)

    x = jax.random.normal(k_x, (2, IN_C, 16, 16), jnp.float32)   # NCHW

    raw = init_raw_params(k_p)
    folded = fold_params(raw)

    out = jax.block_until_ready(inverted_residual(x, folded))
    ref = jax.block_until_ready(ref_forward(x, raw))

    assert out.shape == ref.shape == (2, OUT_C, 16, 16)
    assert jnp.allclose(out, ref, atol=1e-4, rtol=1e-4), (
        f"max abs err {jnp.max(jnp.abs(out - ref))}")

    print("KERNEL_OK")
</pallas_src>

<mosaic_0001>
module attributes {stable_mosaic.version = 11 : i64} {
  func.func @_fused_kernel(%arg0: i32, %arg1: memref<1x4x512xf32, #tpu.memory_space<vmem>>, %arg2: memref<16x32xf32, #tpu.memory_space<vmem>>, %arg3: memref<9x16x512xf32, #tpu.memory_space<vmem>>, %arg4: memref<1x4x512xf32, #tpu.memory_space<vmem>>) attributes {dimension_semantics = [#tpu.dimension_semantics<parallel>], iteration_bounds = array<i64: 1>, scalar_prefetch = 0 : i64, scratch_operands = 0 : i64, tpu.core_type = #tpu.core_type<tc>, window_params = [{transform_indices = @transform_0, window_bounds = array<i64: 1, 4, 512>}, {pipeline_mode = #tpu.pipeline_mode<synchronous>, transform_indices = @transform_1, window_bounds = array<i64: 16, 32>}, {pipeline_mode = #tpu.pipeline_mode<synchronous>, transform_indices = @transform_2, window_bounds = array<i64: 9, 16, 512>}, {transform_indices = @transform_3, window_bounds = array<i64: 1, 4, 512>}]} {
    %c0 = arith.constant 0 : index
    %c0_0 = arith.constant 0 : index
    %c0_1 = arith.constant 0 : index
    %0 = vector.load %arg1[%c0, %c0_0, %c0_1] : memref<1x4x512xf32, #tpu.memory_space<vmem>>, vector<1x4x512xf32>
    %1 = vector.shape_cast %0 : vector<1x4x512xf32> to vector<4x512xf32>
    %c0_2 = arith.constant 0 : index
    %c0_3 = arith.constant 0 : index
    %2 = vector.load %arg2[%c0_2, %c0_3] : memref<16x32xf32, #tpu.memory_space<vmem>>, vector<16x4xf32>
    %c0_4 = arith.constant 0 : index
    %c4 = arith.constant 4 : index
    %3 = vector.load %arg2[%c0_4, %c4] : memref<16x32xf32, #tpu.memory_space<vmem>>, vector<16x1xf32>
    %c0_5 = arith.constant 0 : index
    %c5 = arith.constant 5 : index
    %4 = vector.load %arg2[%c0_5, %c5] : memref<16x32xf32, #tpu.memory_space<vmem>>, vector<16x1xf32>
    %c0_6 = arith.constant 0 : index
    %c6 = arith.constant 6 : index
    %5 = vector.load %arg2[%c0_6, %c6] : memref<16x32xf32, #tpu.memory_space<vmem>>, vector<4x16xf32>
    %c0_7 = arith.constant 0 : index
    %c22 = arith.constant 22 : index
    %6 = vector.load %arg2[%c0_7, %c22] : memref<16x32xf32, #tpu.memory_space<vmem>>, vector<4x1xf32>
    %cst = arith.constant dense<0.000000e+00> : vector<16x512xf32>
    %7 = tpu.matmul %2, %1, %cst {dimension_numbers = #tpu.dot_dimension_numbers<[1], [0], [0], [1], [0, 0, 1, 1], [], []>} : vector<16x4xf32>, vector<4x512xf32>, vector<16x512xf32> -> vector<16x512xf32>
    %8 = vector.broadcast %3 : vector<16x1xf32> to vector<16x512xf32>
    %9 = arith.addf %7, %8 : vector<16x512xf32>
    %cst_8 = arith.constant 0.000000e+00 : f32
    %cst_9 = arith.constant 6.000000e+00 : f32
    %10 = vector.broadcast %cst_8 : f32 to vector<16x512xf32>
    %11 = arith.maximumf %10, %9 : vector<16x512xf32>
    %12 = vector.broadcast %cst_9 : f32 to vector<16x512xf32>
    %13 = arith.minimumf %12, %11 : vector<16x512xf32>
    %c4_10 = arith.constant 4 : index
    %c0_11 = arith.constant 0 : index
    %c0_12 = arith.constant 0 : index
    %14 = vector.load %arg3[%c4_10, %c0_11, %c0_12] : memref<9x16x512xf32, #tpu.memory_space<vmem>>, vector<1x16x512xf32>
    %15 = vector.shape_cast %14 : vector<1x16x512xf32> to vector<16x512xf32>
    %16 = arith.mulf %15, %13 : vector<16x512xf32>
    %c17_i32 = arith.constant 17 : i32
    %17 = tpu.dynamic_rotate %13 by %c17_i32 dim 1 : vector<16x512xf32>, i32 -> vector<16x512xf32>
    %c0_13 = arith.constant 0 : index
    %c0_14 = arith.constant 0 : index
    %c0_15 = arith.constant 0 : index
    %18 = vector.load %arg3[%c0_13, %c0_14, %c0_15] : memref<9x16x512xf32, #tpu.memory_space<vmem>>, vector<1x16x512xf32>
    %19 = vector.shape_cast %18 : vector<1x16x512xf32> to vector<16x512xf32>
    %20 = arith.mulf %19, %17 : vector<16x512xf32>
    %21 = arith.addf %16, %20 : vector<16x512xf32>
    %c16_i32 = arith.constant 16 : i32
    %22 = tpu.dynamic_rotate %13 by %c16_i32 dim 1 : vector<16x512xf32>, i32 -> vector<16x512xf32>
    %c1 = arith.constant 1 : index
    %c0_16 = arith.constant 0 : index
    %c0_17 = arith.constant 0 : index
    %23 = vector.load %arg3[%c1, %c0_16, %c0_17] : memref<9x16x512xf32, #tpu.memory_space<vmem>>, vector<1x16x512xf32>
    %24 = vector.shape_cast %23 : vector<1x16x512xf32> to vector<16x512xf32>
    %25 = arith.mulf %24, %22 : vector<16x512xf32>
    %26 = arith.addf %21, %25 : vector<16x512xf32>
    %c15_i32 = arith.constant 15 : i32
    %27 = tpu.dynamic_rotate %13 by %c15_i32 dim 1 : vector<16x512xf32>, i32 -> vector<16x512xf32>
    %c2 = arith.constant 2 : index
    %c0_18 = arith.constant 0 : index
    %c0_19 = arith.constant 0 : index
    %28 = vector.load %arg3[%c2, %c0_18, %c0_19] : memref<9x16x512xf32, #tpu.memory_space<vmem>>, vector<1x16x512xf32>
    %29 = vector.shape_cast %28 : vector<1x16x512xf32> to vector<16x512xf32>
    %30 = arith.mulf %29, %27 : vector<16x512xf32>
    %31 = arith.addf %26, %30 : vector<16x512xf32>
    %c1_i32 = arith.constant 1 : i32
    %32 = tpu.dynamic_rotate %13 by %c1_i32 dim 1 : vector<16x512xf32>, i32 -> vector<16x512xf32>
    %c3 = arith.constant 3 : index
    %c0_20 = arith.constant 0 : index
    %c0_21 = arith.constant 0 : index
    %33 = vector.load %arg3[%c3, %c0_20, %c0_21] : memref<9x16x512xf32, #tpu.memory_space<vmem>>, vector<1x16x512xf32>
    %34 = vector.shape_cast %33 : vector<1x16x512xf32> to vector<16x512xf32>
    %35 = arith.mulf %34, %32 : vector<16x512xf32>
    %36 = arith.addf %31, %35 : vector<16x512xf32>
    %c511_i32 = arith.constant 511 : i32
    %37 = tpu.dynamic_rotate %13 by %c511_i32 dim 1 : vector<16x512xf32>, i32 -> vector<16x512xf32>
    %c5_22 = arith.constant 5 : index
    %c0_23 = arith.constant 0 : index
    %c0_24 = arith.constant 0 : index
    %38 = vector.load %arg3[%c5_22, %c0_23, %c0_24] : memref<9x16x512xf32, #tpu.memory_space<vmem>>, vector<1x16x512xf32>
    %39 = vector.shape_cast %38 : vector<1x16x512xf32> to vector<16x512xf32>
    %40 = arith.mulf %39, %37 : vector<16x512xf32>
    %41 = arith.addf %36, %40 : vector<16x512xf32>
    %c497_i32 = arith.constant 497 : i32
    %42 = tpu.dynamic_rotate %13 by %c497_i32 dim 1 : vector<16x512xf32>, i32 -> vector<16x512xf32>
    %c6_25 = arith.constant 6 : index
    %c0_26 = arith.constant 0 : index
    %c0_27 = arith.constant 0 : index
    %43 = vector.load %arg3[%c6_25, %c0_26, %c0_27] : memref<9x16x512xf32, #tpu.memory_space<vmem>>, vector<1x16x512xf32>
    %44 = vector.shape_cast %43 : vector<1x16x512xf32> to vector<16x512xf32>
    %45 = arith.mulf %44, %42 : vector<16x512xf32>
    %46 = arith.addf %41, %45 : vector<16x512xf32>
    %c496_i32 = arith.constant 496 : i32
    %47 = tpu.dynamic_rotate %13 by %c496_i32 dim 1 : vector<16x512xf32>, i32 -> vector<16x512xf32>
    %c7 = arith.constant 7 : index
    %c0_28 = arith.constant 0 : index
    %c0_29 = arith.constant 0 : index
    %48 = vector.load %arg3[%c7, %c0_28, %c0_29] : memref<9x16x512xf32, #tpu.memory_space<vmem>>, vector<1x16x512xf32>
    %49 = vector.shape_cast %48 : vector<1x16x512xf32> to vector<16x512xf32>
    %50 = arith.mulf %49, %47 : vector<16x512xf32>
    %51 = arith.addf %46, %50 : vector<16x512xf32>
    %c495_i32 = arith.constant 495 : i32
    %52 = tpu.dynamic_rotate %13 by %c495_i32 dim 1 : vector<16x512xf32>, i32 -> vector<16x512xf32>
    %c8 = arith.constant 8 : index
    %c0_30 = arith.constant 0 : index
    %c0_31 = arith.constant 0 : index
    %53 = vector.load %arg3[%c8, %c0_30, %c0_31] : memref<9x16x512xf32, #tpu.memory_space<vmem>>, vector<1x16x512xf32>
    %54 = vector.shape_cast %53 : vector<1x16x512xf32> to vector<16x512xf32>
    %55 = arith.mulf %54, %52 : vector<16x512xf32>
    %56 = arith.addf %51, %55 : vector<16x512xf32>
    %57 = vector.broadcast %4 : vector<16x1xf32> to vector<16x512xf32>
    %58 = arith.addf %56, %57 : vector<16x512xf32>
    %cst_32 = arith.constant 0.000000e+00 : f32
    %cst_33 = arith.constant 6.000000e+00 : f32
    %59 = vector.broadcast %cst_32 : f32 to vector<16x512xf32>
    %60 = arith.maximumf %59, %58 : vector<16x512xf32>
    %61 = vector.broadcast %cst_33 : f32 to vector<16x512xf32>
    %62 = arith.minimumf %61, %60 : vector<16x512xf32>
    %cst_34 = arith.constant dense<0.000000e+00> : vector<4x512xf32>
    %63 = tpu.matmul %5, %62, %cst_34 {dimension_numbers = #tpu.dot_dimension_numbers<[1], [0], [0], [1], [0, 0, 1, 1], [], []>} : vector<4x16xf32>, vector<16x512xf32>, vector<4x512xf32> -> vector<4x512xf32>
    %64 = vector.broadcast %6 : vector<4x1xf32> to vector<4x512xf32>
    %65 = arith.addf %63, %64 : vector<4x512xf32>
    %66 = arith.addf %65, %1 : vector<4x512xf32>
    %c0_35 = arith.constant 0 : index
    %c0_36 = arith.constant 0 : index
    %c0_37 = arith.constant 0 : index
    %67 = vector.load %arg4[%c0_35, %c0_36, %c0_37] : memref<1x4x512xf32, #tpu.memory_space<vmem>>, vector<1x4x512xf32>
    %68 = vector.shape_cast %67 : vector<1x4x512xf32> to vector<4x512xf32>
    %69 = vector.shape_cast %66 : vector<4x512xf32> to vector<1x4x512xf32>
    tpu.vector_store %arg4[%c0_35, %c0_36, %c0_37], %69 {strides = array<i32>} : memref<1x4x512xf32, #tpu.memory_space<vmem>>, vector<1x4x512xf32>,
    return
  }
  func.func @transform_0(%arg0: i32) -> (i32, i32, i32) {
    %c0_i32 = arith.constant 0 : i32
    %c0_i32_0 = arith.constant 0 : i32
    %c0_i32_1 = arith.constant 0 : i32
    return %arg0, %c0_i32, %c0_i32_0 : i32, i32, i32
  }
  func.func @transform_1(%arg0: i32) -> (i32, i32) {
    %c0_i32 = arith.constant 0 : i32
    %c0_i32_0 = arith.constant 0 : i32
    %c0_i32_1 = arith.constant 0 : i32
    return %c0_i32, %c0_i32_0 : i32, i32
  }
  func.func @transform_2(%arg0: i32) -> (i32, i32, i32) {
    %c0_i32 = arith.constant 0 : i32
    %c0_i32_0 = arith.constant 0 : i32
    %c0_i32_1 = arith.constant 0 : i32
    %c0_i32_2 = arith.constant 0 : i32
    return %c0_i32, %c0_i32_0, %c0_i32_1 : i32, i32, i32
  }
  func.func @transform_3(%arg0: i32) -> (i32, i32, i32) {
    %c0_i32 = arith.constant 0 : i32
    %c0_i32_0 = arith.constant 0 : i32
    %c0_i32_1 = arith.constant 0 : i32
    return %arg0, %c0_i32, %c0_i32_0 : i32, i32, i32
  }
}

</mosaic_0001>

<llo_original>
// kernel: tpu_custom_call.1
$region0: #{tpu_custom_call.1}
  #allocation0 [shape = 'u32[]', space=smem, size = 0x4, offset = 0x4, fixed_abs, tag = 'smem constant byte address 0x4 - core index']
  #allocation1 [shape = 'u32[144,128]{1,0:T(1,128)}', space=vmem, size = 0x12000, scoped, tag = 'internal scratch']
  %s0 = inlined_call_operand.hbm [shape: f32[1,4,512], index: 0, kind: input, shape index: {}]
  %s1 = inlined_call_operand.hbm [shape: f32[16,32], index: 1, kind: input, shape index: {}]
  %s2 = inlined_call_operand.hbm [shape: f32[9,16,512], index: 2, kind: input, shape index: {}]
  %s3 = inlined_call_operand.hbm [shape: f32[1,4,512], index: 3, kind: output, shape index: {}]
  %s4 = sld [smem:[#allocation0]]
  $region34: #{tpu_custom_call.1} parent=0
    _
  %s6 = ssub.s32 1, %s4
  %s7 = scalar_select 0, %s6, %s4
  $region1: #{tpu_custom_call.1} parent=0
    #allocation2 [shape = 'u8[8192]{0}', space=vmem, size = 0x2000, scoped, tag = 'input window, operand 0, single buffered']
    #allocation3 [shape = 's32[1]{0}', space=sflag, size = 0x4, scoped, tag = 'scoped memory for tpu_custom_call.1']
    #allocation4 [shape = 's32[1]{0}', space=sflag, size = 0x4, scoped, tag = 'scoped memory for tpu_custom_call.1']
    #allocation5 [shape = 'u8[8192]{0}', space=vmem, size = 0x2000, scoped, tag = 'input window, operand 1, single buffered']
    #allocation6 [shape = 's32[1]{0}', space=sflag, size = 0x4, scoped, tag = 'scoped memory for tpu_custom_call.1']
    #allocation7 [shape = 'u8[294912]{0}', space=vmem, size = 0x48000, scoped, tag = 'input window, operand 2, single buffered']
    #allocation8 [shape = 'u8[8192]{0}', space=vmem, size = 0x2000, scoped, tag = 'output window, operand 0, single buffered']
    %8 = vsyncpa [#allocation3], 0
    %9 = vsyncpa [#allocation6], 0
    %10 = vsyncpa [#allocation4], 0
    // Predicated region
    $region2: #{tpu_custom_call.1} parent=1 // pred_check
      _
    $region3: #{tpu_custom_call.1} parent=1 // pred_check_branch
      %12 = sbr.rel (0) target = $region5
    $region4: #{tpu_custom_call.1} parent=1 // pred_region
      %s14 = ssub.s32 256, 256
      %15 = vsyncadd [#allocation3], %s14
      %s17 = sshll.u32 [#allocation2], 4
      %s18 = int_to_ptr.vmem [resolvable:$true] %s17
      %20 = dma.hbm_to_vmem [thread:$0]  %s0, 256, %s18, [#allocation3]
    $region5: #{tpu_custom_call.1} parent=1 // pred_fallthru
      _
    // Predicated region
    $region6: #{tpu_custom_call.1} parent=1 // pred_check
      _
    $region7: #{tpu_custom_call.1} parent=1 // pred_check_branch
      %22 = sbr.rel (0) target = $region9
    $region8: #{tpu_custom_call.1} parent=1 // pred_region
      %s24 = ssub.s32 256, 256
      %25 = vsyncadd [#allocation6], %s24
      %s26 = sshll.u32 [#allocation5], 4
      %s27 = int_to_ptr.vmem [resolvable:$true] %s26
      %32 = dma.hbm_to_vmem [thread:$0]  %s1, 256, %s27, [#allocation6], 128, 128, 8
    $region9: #{tpu_custom_call.1} parent=1 // pred_fallthru
      _
    // Predicated region
    $region10: #{tpu_custom_call.1} parent=1 // pred_check
      _
    $region11: #{tpu_custom_call.1} parent=1 // pred_check_branch
      %34 = sbr.rel (0) target = $region13
    $region12: #{tpu_custom_call.1} parent=1 // pred_region
      %s36 = ssub.s32 9216, 9216
      %37 = vsyncadd [#allocation6], %s36
      %s38 = sshll.u32 [#allocation7], 4
      %s39 = int_to_ptr.vmem [resolvable:$true] %s38
      %44 = dma.hbm_to_vmem [thread:$0]  %s2, 9216, %s39, [#allocation6], 512, 512, 32
    $region13: #{tpu_custom_call.1} parent=1 // pred_fallthru
      _
    // Predicated region
    $region14: #{tpu_custom_call.1} parent=1 // pred_check
      _
    $region15: #{tpu_custom_call.1} parent=1 // pred_check_branch
      %46 = sbr.rel (0) target = $region17
    $region16: #{tpu_custom_call.1} parent=1 // pred_region
      %47 = dma.done [#allocation3], 256
    $region17: #{tpu_custom_call.1} parent=1 // pred_fallthru
      _
    // Predicated region
    $region18: #{tpu_custom_call.1} parent=1 // pred_check
      _
    $region19: #{tpu_custom_call.1} parent=1 // pred_check_branch
      %49 = sbr.rel (0) target = $region21
    $region20: #{tpu_custom_call.1} parent=1 // pred_region
      %50 = dma.done [#allocation6], 256
    $region21: #{tpu_custom_call.1} parent=1 // pred_fallthru
      _
    // Predicated region
    $region22: #{tpu_custom_call.1} parent=1 // pred_check
      _
    $region23: #{tpu_custom_call.1} parent=1 // pred_check_branch
      %52 = sbr.rel (0) target = $region25
    $region24: #{tpu_custom_call.1} parent=1 // pred_region
      %53 = dma.done [#allocation6], 9216
    $region25: #{tpu_custom_call.1} parent=1 // pred_fallthru
      _
    %v54 = vld [vmem:[#allocation2] sm:$0xff]
    %v55 = vld [vmem:[#allocation2 + $0x8] sm:$0xff]
    %v56 = vld [vmem:[#allocation5] sm:$0xff]
    %v57 = vld [vmem:[#allocation5 + $0x8] sm:$0xff]
    %v58 = vld [vmem:[#allocation5] sm:$0xf]
    %60 = vset.pattern.permute.xlu0 4
    %61 = vperm.xlu0 %60, %v56
    %v62 = vpop.permute.xlu0 %61
    %65 = vset.pattern.permute.xlu0 4
    %66 = vperm.xlu0 %65, %v57
    %v67 = vpop.permute.xlu0 %66
    %v71 = vcombine.high %v54, %v54
    %v72 = vcombine.high %v55, %v55
    %vm73 = vcmask 31744
    %v74 = vsel %vm73, %v56, 0
    %v76 = vsel %vm73, %v57, 0
    %vm78 = vcmask 1043456
    %v79 = vsel %vm78, %v54, 0
    %v81 = vsel %vm78, %v71, 0
    %v83 = vsel %vm78, %v55, 0
    %v85 = vsel %vm78, %v72, 0
    %87 = vmatprep.subr.mxu0 %v81
    %88 = vmatpush1.msra.mxu0 %v79
    %89 = vmatprep.subr.mxu0 0.0
    %90 = vmatpush1.msra.mxu0 0.0
    %91 = vmatprep.subr.mxu0 0.0
    %92 = vmatpush1.msra.mxu0 0.0
    %93 = vmatprep.subr.mxu0 0.0
    %94 = vmatpush1.msra.mxu0 0.0
    %95 = vmatprep.subr.mxu0 0.0
    %96 = vmatpush1.msra.mxu0 0.0
    %97 = vmatprep.subr.mxu0 0.0
    %98 = vmatpush1.msra.mxu0 0.0
    %99 = vmatprep.subr.mxu0 0.0
    %100 = vmatpush1.msra.mxu0 0.0
    %101 = vmatprep.subr.mxu0 0.0
    %102 = vmatpush1.msra.mxu0 0.0
    %103 = vmatprep.subr.mxu0 0.0
    %104 = vmatpush1.msra.mxu0 0.0
    %105 = vmatprep.subr.mxu0 0.0
    %106 = vmatpush1.msra.mxu0 0.0
    %107 = vmatprep.subr.mxu0 0.0
    %108 = vmatpush1.msra.mxu0 0.0
    %109 = vmatprep.subr.mxu0 0.0
    %110 = vmatpush1.msra.mxu0 0.0
    %111 = vmatprep.subr.mxu0 0.0
    %112 = vmatpush1.msra.mxu0 0.0
    %113 = vmatprep.subr.mxu0 0.0
    %114 = vmatpush1.msra.mxu0 0.0
    %115 = vmatprep.subr.mxu0 0.0
    %116 = vmatpush1.msra.mxu0 0.0
    %117 = vmatprep.subr.mxu0 0.0
    %118 = vmatpush1.msra.mxu0 0.0
    %119 = vmatprep.subr.mxu0 0.0
    %120 = vmatpush1.msra.mxu0 0.0
    %121 = vmatprep.subr.mxu0 0.0
    %122 = vmatpush1.msra.mxu0 0.0
    %123 = vmatprep.subr.mxu0 0.0
    %124 = vmatpush1.msra.mxu0 0.0
    %125 = vmatprep.subr.mxu0 0.0
    %126 = vmatpush1.msra.mxu0 0.0
    %127 = vmatprep.subr.mxu0 0.0
    %128 = vmatpush1.msra.mxu0 0.0
    %129 = vmatprep.subr.mxu0 0.0
    %130 = vmatpush1.msra.mxu0 0.0
    %131 = vmatprep.subr.mxu0 0.0
    %132 = vmatpush1.msra.mxu0 0.0
    %133 = vmatprep.subr.mxu0 0.0
    %134 = vmatpush1.msra.mxu0 0.0
    %135 = vmatprep.subr.mxu0 0.0
    %136 = vmatpush1.msra.mxu0 0.0
    %137 = vmatprep.subr.mxu0 0.0
    %138 = vmatpush1.msra.mxu0 0.0
    %139 = vmatprep.subr.mxu0 0.0
    %140 = vmatpush1.msra.mxu0 0.0
    %141 = vmatprep.subr.mxu0 0.0
    %142 = vmatpush1.msra.mxu0 0.0
    %143 = vmatprep.subr.mxu0 0.0
    %144 = vmatpush1.msra.mxu0 0.0
    %145 = vmatprep.subr.mxu0 0.0
    %146 = vmatpush1.msra.mxu0 0.0
    %147 = vmatprep.subr.mxu0 0.0
    %148 = vmatpush1.msra.mxu0 0.0
    %149 = vmatprep.subr.mxu0 0.0
    %150 = vmatpush1.msra.mxu0 0.0
    %151 = vmatprep.mubr.f32.mxu0 0.0
    %152 = vmatmul.mubr.f32.gmra.mrb[0].mxu0 %v74
    %v153 = vpop.f32.mrb[0].mxu0
    %v154 = vadd.f32 %v62, %v153
    %v155 = vpop.f32.mrb[0].mxu0
    %v156 = vadd.f32 %v62, %v155
    %157 = vmatprep.mubr.f32.mxu0 0.0
    %158 = vmatmul.mubr.f32.gmra.mrb[0].mxu0 %v76
    %v159 = vpop.f32.mrb[0].mxu0
    %v160 = vadd.f32 %v67, %v159
    %v161 = vpop.f32.mrb[0].mxu0
    %v162 = vadd.f32 %v67, %v161
    %163 = vdwg.mxu0
    %164 = vmatprep.subr.mxu0 %v85
    %165 = vmatpush1.msra.mxu0 %v83
    %166 = vmatprep.subr.mxu0 0.0
    %167 = vmatpush1.msra.mxu0 0.0
    %168 = vmatprep.subr.mxu0 0.0
    %169 = vmatpush1.msra.mxu0 0.0
    %170 = vmatprep.subr.mxu0 0.0
    %171 = vmatpush1.msra.mxu0 0.0
    %172 = vmatprep.subr.mxu0 0.0
    %173 = vmatpush1.msra.mxu0 0.0
    %174 = vmatprep.subr.mxu0 0.0
    %175 = vmatpush1.msra.mxu0 0.0
    %176 = vmatprep.subr.mxu0 0.0
    %177 = vmatpush1.msra.mxu0 0.0
    %178 = vmatprep.subr.mxu0 0.0
    %179 = vmatpush1.msra.mxu0 0.0
    %180 = vmatprep.subr.mxu0 0.0
    %181 = vmatpush1.msra.mxu0 0.0
    %182 = vmatprep.subr.mxu0 0.0
    %183 = vmatpush1.msra.mxu0 0.0
    %184 = vmatprep.subr.mxu0 0.0
    %185 = vmatpush1.msra.mxu0 0.0
    %186 = vmatprep.subr.mxu0 0.0
    %187 = vmatpush1.msra.mxu0 0.0
    %188 = vmatprep.subr.mxu0 0.0
    %189 = vmatpush1.msra.mxu0 0.0
    %190 = vmatprep.subr.mxu0 0.0
    %191 = vmatpush1.msra.mxu0 0.0
    %192 = vmatprep.subr.mxu0 0.0
    %193 = vmatpush1.msra.mxu0 0.0
    %194 = vmatprep.subr.mxu0 0.0
    %195 = vmatpush1.msra.mxu0 0.0
    %196 = vmatprep.subr.mxu0 0.0
    %197 = vmatpush1.msra.mxu0 0.0
    %198 = vmatprep.subr.mxu0 0.0
    %199 = vmatpush1.msra.mxu0 0.0
    %200 = vmatprep.subr.mxu0 0.0
    %201 = vmatpush1.msra.mxu0 0.0
    %202 = vmatprep.subr.mxu0 0.0
    %203 = vmatpush1.msra.mxu0 0.0
    %204 = vmatprep.subr.mxu0 0.0
    %205 = vmatpush1.msra.mxu0 0.0
    %206 = vmatprep.subr.mxu0 0.0
    %207 = vmatpush1.msra.mxu0 0.0
    %208 = vmatprep.subr.mxu0 0.0
    %209 = vmatpush1.msra.mxu0 0.0
    %210 = vmatprep.subr.mxu0 0.0
    %211 = vmatpush1.msra.mxu0 0.0
    %212 = vmatprep.subr.mxu0 0.0
    %213 = vmatpush1.msra.mxu0 0.0
    %214 = vmatprep.subr.mxu0 0.0
    %215 = vmatpush1.msra.mxu0 0.0
    %216 = vmatprep.subr.mxu0 0.0
    %217 = vmatpush1.msra.mxu0 0.0
    %218 = vmatprep.subr.mxu0 0.0
    %219 = vmatpush1.msra.mxu0 0.0
    %220 = vmatprep.subr.mxu0 0.0
    %221 = vmatpush1.msra.mxu0 0.0
    %222 = vmatprep.subr.mxu0 0.0
    %223 = vmatpush1.msra.mxu0 0.0
    %224 = vmatprep.subr.mxu0 0.0
    %225 = vmatpush1.msra.mxu0 0.0
    %226 = vmatprep.subr.mxu0 0.0
    %227 = vmatpush1.msra.mxu0 0.0
    %228 = vmatprep.mubr.f32.mxu0 0.0
    %229 = vmatmul.mubr.f32.gmra.mrb[0].mxu0 %v74
    %v230 = vpop.f32.mrb[0].mxu0
    %v231 = vadd.f32 %v62, %v230
    %v232 = vpop.f32.mrb[0].mxu0
    %v233 = vadd.f32 %v62, %v232
    %234 = vmatprep.mubr.f32.mxu0 0.0
    %235 = vmatmul.mubr.f32.gmra.mrb[0].mxu0 %v76
    %v236 = vpop.f32.mrb[0].mxu0
    %v237 = vadd.f32 %v67, %v236
    %v238 = vpop.f32.mrb[0].mxu0
    %v239 = vadd.f32 %v67, %v238
    %240 = vdwg.mxu0
    %v241 = vmax.f32 %v154, 0.0
    %v242 = vmax.f32 %v156, 0.0
    %v243 = vmax.f32 %v231, 0.0
    %v244 = vmax.f32 %v233, 0.0
    %v245 = vmax.f32 %v160, 0.0
    %v246 = vmax.f32 %v162, 0.0
    %v247 = vmax.f32 %v237, 0.0
    %v248 = vmax.f32 %v239, 0.0
    %v249 = vmin.f32 %v241, 6.0
    %v250 = vmin.f32 %v242, 6.0
    %v251 = vmin.f32 %v243, 6.0
    %v252 = vmin.f32 %v244, 6.0
    %v253 = vmin.f32 %v245, 6.0
    %v254 = vmin.f32 %v246, 6.0
    %v255 = vmin.f32 %v247, 6.0
    %v256 = vmin.f32 %v248, 6.0
    %s257 = scalar_lea.vmem [#allocation7], 256
    %v258 = vld [vmem:[%s257] sm:$0xff]
    %v259 = vld [vmem:[%s257 + $0x8] sm:$0xff]
    %v260 = vld [vmem:[%s257 + $0x10] sm:$0xff]
    %v261 = vld [vmem:[%s257 + $0x18] sm:$0xff]
    %v262 = vld [vmem:[%s257 + $0x20] sm:$0xff]
    %v263 = vld [vmem:[%s257 + $0x28] sm:$0xff]
    %v264 = vld [vmem:[%s257 + $0x30] sm:$0xff]
    %v265 = vld [vmem:[%s257 + $0x38] sm:$0xff]
    %v266 = vmul.f32 %v258, %v249
    %v267 = vmul.f32 %v259, %v250
    %v268 = vmul.f32 %v260, %v251
    %v269 = vmul.f32 %v261, %v252
    %v270 = vmul.f32 %v262, %v253
    %v271 = vmul.f32 %v263, %v254
    %v272 = vmul.f32 %v264, %v255
    %v273 = vmul.f32 %v265, %v256
    %274 = vrot.lane.b32.xlu0 %v249, 17
    %v275 = vpop.permute.xlu0 %274
    %276 = vrot.lane.b32.xlu0 %v253, 17
    %v277 = vpop.permute.xlu0 %276
    %278 = vrot.lane.b32.xlu0 %v250, 17
    %v279 = vpop.permute.xlu0 %278
    %280 = vrot.lane.b32.xlu0 %v254, 17
    %v281 = vpop.permute.xlu0 %280
    %282 = vrot.lane.b32.xlu0 %v251, 17
    %v283 = vpop.permute.xlu0 %282
    %284 = vrot.lane.b32.xlu0 %v255, 17
    %v285 = vpop.permute.xlu0 %284
    %286 = vrot.lane.b32.xlu0 %v252, 17
    %v287 = vpop.permute.xlu0 %286
    %288 = vrot.lane.b32.xlu0 %v256, 17
    %v289 = vpop.permute.xlu0 %288
    %v290 = vlaneseq
    %v291 = vand.u32 %v290, 127
    %vm292 = vcmp.lt.s32.totalorder %v291, 17
    %v293 = vsel %vm292, %v283, %v287
    %v294 = vsel %vm292, %v285, %v289
    %v295 = vsel %vm292, %v279, %v283
    %v296 = vsel %vm292, %v281, %v285
    %v297 = vsel %vm292, %v275, %v279
    %v298 = vsel %vm292, %v277, %v281
    %v299 = vsel %vm292, %v287, %v275
    %v300 = vsel %vm292, %v289, %v277
    %v301 = vld [vmem:[#allocation7] sm:$0xff]
    %v302 = vld [vmem:[#allocation7 + $0x8] sm:$0xff]
    %v303 = vld [vmem:[#allocation7 + $0x10] sm:$0xff]
    %v304 = vld [vmem:[#allocation7 + $0x18] sm:$0xff]
    %v305 = vld [vmem:[#allocation7 + $0x20] sm:$0xff]
    %v306 = vld [vmem:[#allocation7 + $0x28] sm:$0xff]
    %v307 = vld [vmem:[#allocation7 + $0x30] sm:$0xff]
    %v308 = vld [vmem:[#allocation7 + $0x38] sm:$0xff]
    %v309 = vmul.f32 %v301, %v299
    %v310 = vmul.f32 %v302, %v297
    %v311 = vmul.f32 %v303, %v295
    %v312 = vmul.f32 %v304, %v293
    %v313 = vmul.f32 %v305, %v300
    %v314 = vmul.f32 %v306, %v298
    %v315 = vmul.f32 %v307, %v296
    %v316 = vmul.f32 %v308, %v294
    %v317 = vadd.f32 %v266, %v309
    %v318 = vadd.f32 %v267, %v310
    %v319 = vadd.f32 %v268, %v311
    %v320 = vadd.f32 %v269, %v312
    %v321 = vadd.f32 %v270, %v313
    %v322 = vadd.f32 %v271, %v314
    %v323 = vadd.f32 %v272, %v315
    %v324 = vadd.f32 %v273, %v316
    %325 = vrot.lane.b32.xlu0 %v249, 16
    %v326 = vpop.permute.xlu0 %325
    %327 = vrot.lane.b32.xlu0 %v253, 16
    %v328 = vpop.permute.xlu0 %327
    %329 = vrot.lane.b32.xlu0 %v250, 16
    %v330 = vpop.permute.xlu0 %329
    %331 = vrot.lane.b32.xlu0 %v254, 16
    %v332 = vpop.permute.xlu0 %331
    %333 = vrot.lane.b32.xlu0 %v251, 16
    %v334 = vpop.permute.xlu0 %333
    %335 = vrot.lane.b32.xlu0 %v255, 16
    %v336 = vpop.permute.xlu0 %335
    %337 = vrot.lane.b32.xlu0 %v252, 16
    %v338 = vpop.permute.xlu0 %337
    %339 = vrot.lane.b32.xlu0 %v256, 16
    %v340 = vpop.permute.xlu0 %339
    %vm341 = vcmp.lt.s32.totalorder %v291, 16
    %v342 = vsel %vm341, %v334, %v338
    %v343 = vsel %vm341, %v336, %v340
    %v344 = vsel %vm341, %v330, %v334
    %v345 = vsel %vm341, %v332, %v336
    %v346 = vsel %vm341, %v326, %v330
    %v347 = vsel %vm341, %v328, %v332
    %v348 = vsel %vm341, %v338, %v326
    %v349 = vsel %vm341, %v340, %v328
    %s350 = scalar_lea.vmem [#allocation7], 64
    %v351 = vld [vmem:[%s350] sm:$0xff]
    %v352 = vld [vmem:[%s350 + $0x8] sm:$0xff]
    %v353 = vld [vmem:[%s350 + $0x10] sm:$0xff]
    %v354 = vld [vmem:[%s350 + $0x18] sm:$0xff]
    %v355 = vld [vmem:[%s350 + $0x20] sm:$0xff]
    %v356 = vld [vmem:[%s350 + $0x28] sm:$0xff]
    %v357 = vld [vmem:[%s350 + $0x30] sm:$0xff]
    %v358 = vld [vmem:[%s350 + $0x38] sm:$0xff]
    %v359 = vmul.f32 %v351, %v348
    %v360 = vmul.f32 %v352, %v346
    %v361 = vmul.f32 %v353, %v344
    %v362 = vmul.f32 %v354, %v342
    %v363 = vmul.f32 %v355, %v349
    %v364 = vmul.f32 %v356, %v347
    %v365 = vmul.f32 %v357, %v345
    %v366 = vmul.f32 %v358, %v343
    %v367 = vadd.f32 %v317, %v359
    %v368 = vadd.f32 %v318, %v360
    %v369 = vadd.f32 %v319, %v361
    %v370 = vadd.f32 %v320, %v362
    %v371 = vadd.f32 %v321, %v363
    %v372 = vadd.f32 %v322, %v364
    %v373 = vadd.f32 %v323, %v365
    %v374 = vadd.f32 %v324, %v366
    %375 = vrot.lane.b32.xlu0 %v249, 15
    %v376 = vpop.permute.xlu0 %375
    %377 = vrot.lane.b32.xlu0 %v253, 15
    %v378 = vpop.permute.xlu0 %377
    %379 = vrot.lane.b32.xlu0 %v250, 15
    %v380 = vpop.permute.xlu0 %379
    %381 = vrot.lane.b32.xlu0 %v254, 15
    %v382 = vpop.permute.xlu0 %381
    %383 = vrot.lane.b32.xlu0 %v251, 15
    %v384 = vpop.permute.xlu0 %383
    %385 = vrot.lane.b32.xlu0 %v255, 15
    %v386 = vpop.permute.xlu0 %385
    %387 = vrot.lane.b32.xlu0 %v252, 15
    %v388 = vpop.permute.xlu0 %387
    %389 = vrot.lane.b32.xlu0 %v256, 15
    %v390 = vpop.permute.xlu0 %389
    %vm391 = vcmp.lt.s32.totalorder %v291, 15
    %v392 = vsel %vm391, %v384, %v388
    %v393 = vsel %vm391, %v386, %v390
    %v394 = vsel %vm391, %v380, %v384
    %v395 = vsel %vm391, %v382, %v386
    %v396 = vsel %vm391, %v376, %v380
    %v397 = vsel %vm391, %v378, %v382
    %v398 = vsel %vm391, %v388, %v376
    %v399 = vsel %vm391, %v390, %v378
    %s400 = scalar_lea.vmem [#allocation7], 128
    %v401 = vld [vmem:[%s400] sm:$0xff]
    %v402 = vld [vmem:[%s400 + $0x8] sm:$0xff]
    %v403 = vld [vmem:[%s400 + $0x10] sm:$0xff]
    %v404 = vld [vmem:[%s400 + $0x18] sm:$0xff]
    %v405 = vld [vmem:[%s400 + $0x20] sm:$0xff]
    %v406 = vld [vmem:[%s400 + $0x28] sm:$0xff]
    %v407 = vld [vmem:[%s400 + $0x30] sm:$0xff]
    %v408 = vld [vmem:[%s400 + $0x38] sm:$0xff]
    %v409 = vmul.f32 %v401, %v398
    %v410 = vmul.f32 %v402, %v396
    %v411 = vmul.f32 %v403, %v394
    %v412 = vmul.f32 %v404, %v392
    %v413 = vmul.f32 %v405, %v399
    %v414 = vmul.f32 %v406, %v397
    %v415 = vmul.f32 %v407, %v395
    %v416 = vmul.f32 %v408, %v393
    %v417 = vadd.f32 %v367, %v409
    %v418 = vadd.f32 %v368, %v410
    %v419 = vadd.f32 %v369, %v411
    %v420 = vadd.f32 %v370, %v412
    %v421 = vadd.f32 %v371, %v413
    %v422 = vadd.f32 %v372, %v414
    %v423 = vadd.f32 %v373, %v415
    %v424 = vadd.f32 %v374, %v416
    %425 = vrot.lane.b32.xlu0 %v249, 1
    %v426 = vpop.permute.xlu0 %425
    %427 = vrot.lane.b32.xlu0 %v253, 1
    %v428 = vpop.permute.xlu0 %427
    %429 = vrot.lane.b32.xlu0 %v250, 1
    %v430 = vpop.permute.xlu0 %429
    %431 = vrot.lane.b32.xlu0 %v254, 1
    %v432 = vpop.permute.xlu0 %431
    %433 = vrot.lane.b32.xlu0 %v251, 1
    %v434 = vpop.permute.xlu0 %433
    %435 = vrot.lane.b32.xlu0 %v255, 1
    %v436 = vpop.permute.xlu0 %435
    %437 = vrot.lane.b32.xlu0 %v252, 1
    %v438 = vpop.permute.xlu0 %437
    %439 = vrot.lane.b32.xlu0 %v256, 1
    %v440 = vpop.permute.xlu0 %439
    %vm441 = vcmp.lt.s32.totalorder %v291, 1
    %v442 = vsel %vm441, %v434, %v438
    %v443 = vsel %vm441, %v436, %v440
    %v444 = vsel %vm441, %v430, %v434
    %v445 = vsel %vm441, %v432, %v436
    %v446 = vsel %vm441, %v426, %v430
    %v447 = vsel %vm441, %v428, %v432
    %v448 = vsel %vm441, %v438, %v426
    %v449 = vsel %vm441, %v440, %v428
    %s450 = scalar_lea.vmem [#allocation7], 192
    %v451 = vld [vmem:[%s450] sm:$0xff]
    %v452 = vld [vmem:[%s450 + $0x8] sm:$0xff]
    %v453 = vld [vmem:[%s450 + $0x10] sm:$0xff]
    %v454 = vld [vmem:[%s450 + $0x18] sm:$0xff]
    %v455 = vld [vmem:[%s450 + $0x20] sm:$0xff]
    %v456 = vld [vmem:[%s450 + $0x28] sm:$0xff]
    %v457 = vld [vmem:[%s450 + $0x30] sm:$0xff]
    %v458 = vld [vmem:[%s450 + $0x38] sm:$0xff]
    %v459 = vmul.f32 %v451, %v448
    %v460 = vmul.f32 %v452, %v446
    %v461 = vmul.f32 %v453, %v444
    %v462 = vmul.f32 %v454, %v442
    %v463 = vmul.f32 %v455, %v449
    %v464 = vmul.f32 %v456, %v447
    %v465 = vmul.f32 %v457, %v445
    %v466 = vmul.f32 %v458, %v443
    %v467 = vadd.f32 %v417, %v459
    %v468 = vadd.f32 %v418, %v460
    %v469 = vadd.f32 %v419, %v461
    %v470 = vadd.f32 %v420, %v462
    %v471 = vadd.f32 %v421, %v463
    %v472 = vadd.f32 %v422, %v464
    %v473 = vadd.f32 %v423, %v465
    %v474 = vadd.f32 %v424, %v466
    %475 = vrot.lane.b32.xlu0 %v249, 127
    %v476 = vpop.permute.xlu0 %475
    %477 = vrot.lane.b32.xlu0 %v253, 127
    %v478 = vpop.permute.xlu0 %477
    %479 = vrot.lane.b32.xlu0 %v250, 127
    %v480 = vpop.permute.xlu0 %479
    %481 = vrot.lane.b32.xlu0 %v254, 127
    %v482 = vpop.permute.xlu0 %481
    %483 = vrot.lane.b32.xlu0 %v251, 127
    %v484 = vpop.permute.xlu0 %483
    %485 = vrot.lane.b32.xlu0 %v255, 127
    %v486 = vpop.permute.xlu0 %485
    %487 = vrot.lane.b32.xlu0 %v252, 127
    %v488 = vpop.permute.xlu0 %487
    %489 = vrot.lane.b32.xlu0 %v256, 127
    %v490 = vpop.permute.xlu0 %489
    %vm491 = vcmp.lt.s32.totalorder %v291, 127
    %v492 = vsel %vm491, %v484, %v488
    %v493 = vsel %vm491, %v486, %v490
    %v494 = vsel %vm491, %v480, %v484
    %v495 = vsel %vm491, %v482, %v486
    %v496 = vsel %vm491, %v476, %v480
    %v497 = vsel %vm491, %v478, %v482
    %v498 = vsel %vm491, %v488, %v476
    %v499 = vsel %vm491, %v490, %v478
    %s500 = scalar_lea.vmem [#allocation7], 320
    %v501 = vld [vmem:[%s500] sm:$0xff]
    %v502 = vld [vmem:[%s500 + $0x8] sm:$0xff]
    %v503 = vld [vmem:[%s500 + $0x10] sm:$0xff]
    %v504 = vld [vmem:[%s500 + $0x18] sm:$0xff]
    %v505 = vld [vmem:[%s500 + $0x20] sm:$0xff]
    %v506 = vld [vmem:[%s500 + $0x28] sm:$0xff]
    %v507 = vld [vmem:[%s500 + $0x30] sm:$0xff]
    %v508 = vld [vmem:[%s500 + $0x38] sm:$0xff]
    %v509 = vmul.f32 %v501, %v496
    %v510 = vmul.f32 %v502, %v494
    %v511 = vmul.f32 %v503, %v492
    %v512 = vmul.f32 %v504, %v498
    %v513 = vmul.f32 %v505, %v497
    %v514 = vmul.f32 %v506, %v495
    %v515 = vmul.f32 %v507, %v493
    %v516 = vmul.f32 %v508, %v499
    %v517 = vadd.f32 %v467, %v509
    %v518 = vadd.f32 %v468, %v510
    %v519 = vadd.f32 %v469, %v511
    %v520 = vadd.f32 %v470, %v512
    %v521 = vadd.f32 %v471, %v513
    %v522 = vadd.f32 %v472, %v514
    %v523 = vadd.f32 %v473, %v515
    %v524 = vadd.f32 %v474, %v516
    %525 = vrot.lane.b32.xlu0 %v249, 113
    %v526 = vpop.permute.xlu0 %525
    %527 = vrot.lane.b32.xlu0 %v253, 113
    %v528 = vpop.permute.xlu0 %527
    %529 = vrot.lane.b32.xlu0 %v250, 113
    %v530 = vpop.permute.xlu0 %529
    %531 = vrot.lane.b32.xlu0 %v254, 113
    %v532 = vpop.permute.xlu0 %531
    %533 = vrot.lane.b32.xlu0 %v251, 113
    %v534 = vpop.permute.xlu0 %533
    %535 = vrot.lane.b32.xlu0 %v255, 113
    %v536 = vpop.permute.xlu0 %535
    %537 = vrot.lane.b32.xlu0 %v252, 113
    %v538 = vpop.permute.xlu0 %537
    %539 = vrot.lane.b32.xlu0 %v256, 113
    %v540 = vpop.permute.xlu0 %539
    %vm541 = vcmp.lt.s32.totalorder %v291, 113
    %v542 = vsel %vm541, %v534, %v538
    %v543 = vsel %vm541, %v536, %v540
    %v544 = vsel %vm541, %v530, %v534
    %v545 = vsel %vm541, %v532, %v536
    %v546 = vsel %vm541, %v526, %v530
    %v547 = vsel %vm541, %v528, %v532
    %v548 = vsel %vm541, %v538, %v526
    %v549 = vsel %vm541, %v540, %v528
    %s550 = scalar_lea.vmem [#allocation7], 384
    %v551 = vld [vmem:[%s550] sm:$0xff]
    %v552 = vld [vmem:[%s550 + $0x8] sm:$0xff]
    %v553 = vld [vmem:[%s550 + $0x10] sm:$0xff]
    %v554 = vld [vmem:[%s550 + $0x18] sm:$0xff]
    %v555 = vld [vmem:[%s550 + $0x20] sm:$0xff]
    %v556 = vld [vmem:[%s550 + $0x28] sm:$0xff]
    %v557 = vld [vmem:[%s550 + $0x30] sm:$0xff]
    %v558 = vld [vmem:[%s550 + $0x38] sm:$0xff]
    %v559 = vmul.f32 %v551, %v546
    %v560 = vmul.f32 %v552, %v544
    %v561 = vmul.f32 %v553, %v542
    %v562 = vmul.f32 %v554, %v548
    %v563 = vmul.f32 %v555, %v547
    %v564 = vmul.f32 %v556, %v545
    %v565 = vmul.f32 %v557, %v543
    %v566 = vmul.f32 %v558, %v549
    %v567 = vadd.f32 %v517, %v559
    %v568 = vadd.f32 %v518, %v560
    %v569 = vadd.f32 %v519, %v561
    %v570 = vadd.f32 %v520, %v562
    %v571 = vadd.f32 %v521, %v563
    %v572 = vadd.f32 %v522, %v564
    %v573 = vadd.f32 %v523, %v565
    %v574 = vadd.f32 %v524, %v566
    %575 = vrot.lane.b32.xlu0 %v249, 112
    %v576 = vpop.permute.xlu0 %575
    %577 = vrot.lane.b32.xlu0 %v253, 112
    %v578 = vpop.permute.xlu0 %577
    %579 = vrot.lane.b32.xlu0 %v250, 112
    %v580 = vpop.permute.xlu0 %579
    %581 = vrot.lane.b32.xlu0 %v254, 112
    %v582 = vpop.permute.xlu0 %581
    %583 = vrot.lane.b32.xlu0 %v251, 112
    %v584 = vpop.permute.xlu0 %583
    %585 = vrot.lane.b32.xlu0 %v255, 112
    %v586 = vpop.permute.xlu0 %585
    %587 = vrot.lane.b32.xlu0 %v252, 112
    %v588 = vpop.permute.xlu0 %587
    %589 = vrot.lane.b32.xlu0 %v256, 112
    %v590 = vpop.permute.xlu0 %589
    %vm591 = vcmp.lt.s32.totalorder %v291, 112
    %v592 = vsel %vm591, %v584, %v588
    %v593 = vsel %vm591, %v586, %v590
    %v594 = vsel %vm591, %v580, %v584
    %v595 = vsel %vm591, %v582, %v586
    %v596 = vsel %vm591, %v576, %v580
    %v597 = vsel %vm591, %v578, %v582
    %v598 = vsel %vm591, %v588, %v576
    %v599 = vsel %vm591, %v590, %v578
    %s600 = scalar_lea.vmem [#allocation7], 448
    %v601 = vld [vmem:[%s600] sm:$0xff]
    %v602 = vld [vmem:[%s600 + $0x8] sm:$0xff]
    %v603 = vld [vmem:[%s600 + $0x10] sm:$0xff]
    %v604 = vld [vmem:[%s600 + $0x18] sm:$0xff]
    %v605 = vld [vmem:[%s600 + $0x20] sm:$0xff]
    %v606 = vld [vmem:[%s600 + $0x28] sm:$0xff]
    %v607 = vld [vmem:[%s600 + $0x30] sm:$0xff]
    %v608 = vld [vmem:[%s600 + $0x38] sm:$0xff]
    %v609 = vmul.f32 %v601, %v596
    %v610 = vmul.f32 %v602, %v594
    %v611 = vmul.f32 %v603, %v592
    %v612 = vmul.f32 %v604, %v598
    %v613 = vmul.f32 %v605, %v597
    %v614 = vmul.f32 %v606, %v595
    %v615 = vmul.f32 %v607, %v593
    %v616 = vmul.f32 %v608, %v599
    %v617 = vadd.f32 %v567, %v609
    %v618 = vadd.f32 %v568, %v610
    %v619 = vadd.f32 %v569, %v611
    %v620 = vadd.f32 %v570, %v612
    %v621 = vadd.f32 %v571, %v613
    %v622 = vadd.f32 %v572, %v614
    %v623 = vadd.f32 %v573, %v615
    %v624 = vadd.f32 %v574, %v616
    %625 = vrot.lane.b32.xlu0 %v249, 111
    %v626 = vpop.permute.xlu0 %625
    %627 = vrot.lane.b32.xlu0 %v253, 111
    %v628 = vpop.permute.xlu0 %627
    %629 = vrot.lane.b32.xlu0 %v250, 111
    %v630 = vpop.permute.xlu0 %629
    %631 = vrot.lane.b32.xlu0 %v254, 111
    %v632 = vpop.permute.xlu0 %631
    %633 = vrot.lane.b32.xlu0 %v251, 111
    %v634 = vpop.permute.xlu0 %633
    %635 = vrot.lane.b32.xlu0 %v255, 111
    %v636 = vpop.permute.xlu0 %635
    %637 = vrot.lane.b32.xlu0 %v252, 111
    %v638 = vpop.permute.xlu0 %637
    %639 = vrot.lane.b32.xlu0 %v256, 111
    %v640 = vpop.permute.xlu0 %639
    %vm641 = vcmp.lt.s32.totalorder %v291, 111
    %v642 = vsel %vm641, %v634, %v638
    %v643 = vsel %vm641, %v636, %v640
    %v644 = vsel %vm641, %v630, %v634
    %v645 = vsel %vm641, %v632, %v636
    %v646 = vsel %vm641, %v626, %v630
    %v647 = vsel %vm641, %v628, %v632
    %v648 = vsel %vm641, %v638, %v626
    %v649 = vsel %vm641, %v640, %v628
    %s650 = scalar_lea.vmem [#allocation7], 512
    %v651 = vld [vmem:[%s650] sm:$0xff]
    %v652 = vld [vmem:[%s650 + $0x8] sm:$0xff]
    %v653 = vld [vmem:[%s650 + $0x10] sm:$0xff]
    %v654 = vld [vmem:[%s650 + $0x18] sm:$0xff]
    %v655 = vld [vmem:[%s650 + $0x20] sm:$0xff]
    %v656 = vld [vmem:[%s650 + $0x28] sm:$0xff]
    %v657 = vld [vmem:[%s650 + $0x30] sm:$0xff]
    %v658 = vld [vmem:[%s650 + $0x38] sm:$0xff]
    %v659 = vmul.f32 %v651, %v646
    %v660 = vmul.f32 %v652, %v644
    %v661 = vmul.f32 %v653, %v642
    %v662 = vmul.f32 %v654, %v648
    %v663 = vmul.f32 %v655, %v647
    %v664 = vmul.f32 %v656, %v645
    %v665 = vmul.f32 %v657, %v643
    %v666 = vmul.f32 %v658, %v649
    %v667 = vadd.f32 %v617, %v659
    %v668 = vadd.f32 %v618, %v660
    %v669 = vadd.f32 %v619, %v661
    %v670 = vadd.f32 %v620, %v662
    %v671 = vadd.f32 %v621, %v663
    %v672 = vadd.f32 %v622, %v664
    %v673 = vadd.f32 %v623, %v665
    %v674 = vadd.f32 %v624, %v666
    %675 = vset.pattern.permute.xlu0 5
    %676 = vperm.xlu0 %675, %v56
    %v677 = vpop.permute.xlu0 %676
    %679 = vset.pattern.permute.xlu0 5
    %680 = vperm.xlu0 %679, %v57
    %v681 = vpop.permute.xlu0 %680
    %v683 = vadd.f32 %v667, %v677
    %v684 = vadd.f32 %v668, %v677
    %v685 = vadd.f32 %v669, %v677
    %v686 = vadd.f32 %v670, %v677
    %v687 = vadd.f32 %v671, %v681
    %v688 = vadd.f32 %v672, %v681
    %v689 = vadd.f32 %v673, %v681
    %v690 = vadd.f32 %v674, %v681
    %v691 = vmax.f32 %v683, 0.0
    %v692 = vmax.f32 %v684, 0.0
    %v693 = vmax.f32 %v685, 0.0
    %v694 = vmax.f32 %v686, 0.0
    %v695 = vmax.f32 %v687, 0.0
    %v696 = vmax.f32 %v688, 0.0
    %v697 = vmax.f32 %v689, 0.0
    %v698 = vmax.f32 %v690, 0.0
    %v699 = vmin.f32 %v691, 6.0
    %v700 = vmin.f32 %v692, 6.0
    %v701 = vmin.f32 %v693, 6.0
    %v702 = vmin.f32 %v694, 6.0
    %v703 = vmin.f32 %v695, 6.0
    %v704 = vmin.f32 %v696, 6.0
    %v705 = vmin.f32 %v697, 6.0
    %v706 = vmin.f32 %v698, 6.0
    %708 = vset.pattern.permute.xlu0 22
    %709 = vperm.xlu0 %708, %v58
    %v710 = vpop.permute.xlu0 %709
    %712 = vrot.lane.b32.xlu0 %v58, 122
    %v713 = vpop.permute.xlu0 %712
    %vm714 = vcmask 130048
    %v715 = vsel %vm714, %v713, 0
    %717 = vmatprep.subr.mxu0 %v700
    %718 = vmatpush1.msra.mxu0 %v699
    %719 = vmatprep.subr.mxu0 %v704
    %720 = vmatpush1.msra.mxu0 %v703
    %721 = vmatprep.subr.mxu0 0.0
    %722 = vmatpush1.msra.mxu0 0.0
    %723 = vmatprep.subr.mxu0 0.0
    %724 = vmatpush1.msra.mxu0 0.0
    %725 = vmatprep.subr.mxu0 0.0
    %726 = vmatpush1.msra.mxu0 0.0
    %727 = vmatprep.subr.mxu0 0.0
    %728 = vmatpush1.msra.mxu0 0.0
    %729 = vmatprep.subr.mxu0 0.0
    %730 = vmatpush1.msra.mxu0 0.0
    %731 = vmatprep.subr.mxu0 0.0
    %732 = vmatpush1.msra.mxu0 0.0
    %733 = vmatprep.subr.mxu0 0.0
    %734 = vmatpush1.msra.mxu0 0.0
    %735 = vmatprep.subr.mxu0 0.0
    %736 = vmatpush1.msra.mxu0 0.0
    %737 = vmatprep.subr.mxu0 0.0
    %738 = vmatpush1.msra.mxu0 0.0
    %739 = vmatprep.subr.mxu0 0.0
    %740 = vmatpush1.msra.mxu0 0.0
    %741 = vmatprep.subr.mxu0 0.0
    %742 = vmatpush1.msra.mxu0 0.0
    %743 = vmatprep.subr.mxu0 0.0
    %744 = vmatpush1.msra.mxu0 0.0
    %745 = vmatprep.subr.mxu0 0.0
    %746 = vmatpush1.msra.mxu0 0.0
    %747 = vmatprep.subr.mxu0 0.0
    %748 = vmatpush1.msra.mxu0 0.0
    %749 = vmatprep.subr.mxu0 0.0
    %750 = vmatpush1.msra.mxu0 0.0
    %751 = vmatprep.subr.mxu0 0.0
    %752 = vmatpush1.msra.mxu0 0.0
    %753 = vmatprep.subr.mxu0 0.0
    %754 = vmatpush1.msra.mxu0 0.0
    %755 = vmatprep.subr.mxu0 0.0
    %756 = vmatpush1.msra.mxu0 0.0
    %757 = vmatprep.subr.mxu0 0.0
    %758 = vmatpush1.msra.mxu0 0.0
    %759 = vmatprep.subr.mxu0 0.0
    %760 = vmatpush1.msra.mxu0 0.0
    %761 = vmatprep.subr.mxu0 0.0
    %762 = vmatpush1.msra.mxu0 0.0
    %763 = vmatprep.subr.mxu0 0.0
    %764 = vmatpush1.msra.mxu0 0.0
    %765 = vmatprep.subr.mxu0 0.0
    %766 = vmatpush1.msra.mxu0 0.0
    %767 = vmatprep.subr.mxu0 0.0
    %768 = vmatpush1.msra.mxu0 0.0
    %769 = vmatprep.subr.mxu0 0.0
    %770 = vmatpush1.msra.mxu0 0.0
    %771 = vmatprep.subr.mxu0 0.0
    %772 = vmatpush1.msra.mxu0 0.0
    %773 = vmatprep.subr.mxu0 0.0
    %774 = vmatpush1.msra.mxu0 0.0
    %775 = vmatprep.subr.mxu0 0.0
    %776 = vmatpush1.msra.mxu0 0.0
    %777 = vmatprep.subr.mxu0 0.0
    %778 = vmatpush1.msra.mxu0 0.0
    %779 = vmatprep.subr.mxu0 0.0
    %780 = vmatpush1.msra.mxu0 0.0
    %781 = vmatprep.mubr.f32.mxu0 0.0
    %782 = vmatmul.mubr.f32.gmra.mrb[0].mxu0 %v715
    %v783 = vpop.f32.mrb[0].mxu0
    %v784 = vadd.f32 %v710, %v783
    %v785 = vpop.f32.mrb[0].mxu0
    %v786 = vadd.f32 %v710, %v785
    %787 = vdwg.mxu0
    %788 = vmatprep.subr.mxu0 %v702
    %789 = vmatpush1.msra.mxu0 %v701
    %790 = vmatprep.subr.mxu0 %v706
    %791 = vmatpush1.msra.mxu0 %v705
    %792 = vmatprep.subr.mxu0 0.0
    %793 = vmatpush1.msra.mxu0 0.0
    %794 = vmatprep.subr.mxu0 0.0
    %795 = vmatpush1.msra.mxu0 0.0
    %796 = vmatprep.subr.mxu0 0.0
    %797 = vmatpush1.msra.mxu0 0.0
    %798 = vmatprep.subr.mxu0 0.0
    %799 = vmatpush1.msra.mxu0 0.0
    %800 = vmatprep.subr.mxu0 0.0
    %801 = vmatpush1.msra.mxu0 0.0
    %802 = vmatprep.subr.mxu0 0.0
    %803 = vmatpush1.msra.mxu0 0.0
    %804 = vmatprep.subr.mxu0 0.0
    %805 = vmatpush1.msra.mxu0 0.0
    %806 = vmatprep.subr.mxu0 0.0
    %807 = vmatpush1.msra.mxu0 0.0
    %808 = vmatprep.subr.mxu0 0.0
    %809 = vmatpush1.msra.mxu0 0.0
    %810 = vmatprep.subr.mxu0 0.0
    %811 = vmatpush1.msra.mxu0 0.0
    %812 = vmatprep.subr.mxu0 0.0
    %813 = vmatpush1.msra.mxu0 0.0
    %814 = vmatprep.subr.mxu0 0.0
    %815 = vmatpush1.msra.mxu0 0.0
    %816 = vmatprep.subr.mxu0 0.0
    %817 = vmatpush1.msra.mxu0 0.0
    %818 = vmatprep.subr.mxu0 0.0
    %819 = vmatpush1.msra.mxu0 0.0
    %820 = vmatprep.subr.mxu0 0.0
    %821 = vmatpush1.msra.mxu0 0.0
    %822 = vmatprep.subr.mxu0 0.0
    %823 = vmatpush1.msra.mxu0 0.0
    %824 = vmatprep.subr.mxu0 0.0
    %825 = vmatpush1.msra.mxu0 0.0
    %826 = vmatprep.subr.mxu0 0.0
    %827 = vmatpush1.msra.mxu0 0.0
    %828 = vmatprep.subr.mxu0 0.0
    %829 = vmatpush1.msra.mxu0 0.0
    %830 = vmatprep.subr.mxu0 0.0
    %831 = vmatpush1.msra.mxu0 0.0
    %832 = vmatprep.subr.mxu0 0.0
    %833 = vmatpush1.msra.mxu0 0.0
    %834 = vmatprep.subr.mxu0 0.0
    %835 = vmatpush1.msra.mxu0 0.0
    %836 = vmatprep.subr.mxu0 0.0
    %837 = vmatpush1.msra.mxu0 0.0
    %838 = vmatprep.subr.mxu0 0.0
    %839 = vmatpush1.msra.mxu0 0.0
    %840 = vmatprep.subr.mxu0 0.0
    %841 = vmatpush1.msra.mxu0 0.0
    %842 = vmatprep.subr.mxu0 0.0
    %843 = vmatpush1.msra.mxu0 0.0
    %844 = vmatprep.subr.mxu0 0.0
    %845 = vmatpush1.msra.mxu0 0.0
    %846 = vmatprep.subr.mxu0 0.0
    %847 = vmatpush1.msra.mxu0 0.0
    %848 = vmatprep.subr.mxu0 0.0
    %849 = vmatpush1.msra.mxu0 0.0
    %850 = vmatprep.subr.mxu0 0.0
    %851 = vmatpush1.msra.mxu0 0.0
    %852 = vmatprep.mubr.f32.mxu0 0.0
    %853 = vmatmul.mubr.f32.gmra.mrb[0].mxu0 %v715
    %v854 = vpop.f32.mrb[0].mxu0
    %v855 = vadd.f32 %v710, %v854
    %v856 = vpop.f32.mrb[0].mxu0
    %v857 = vadd.f32 %v710, %v856
    %858 = vdwg.mxu0
    %v861 = vadd.f32 %v784, %v54
    %v862 = vadd.f32 %v786, %v71
    %v863 = vadd.f32 %v855, %v55
    %v864 = vadd.f32 %v857, %v72
    %v869 = vcombine.low %v861, %v862
    %v870 = vcombine.low %v863, %v864
    %873 = vst [vmem:[#allocation8] sm:$0xff] %v869
    %874 = vst [vmem:[#allocation8 + $0x8] sm:$0xff] %v870
    // Predicated region
    $region26: #{tpu_custom_call.1} parent=1 // pred_check
      _
    $region27: #{tpu_custom_call.1} parent=1 // pred_check_branch
      %876 = sbr.rel (0) target = $region29
    $region28: #{tpu_custom_call.1} parent=1 // pred_region
      %s878 = ssub.s32 256, 256
      %879 = vsyncadd [#allocation4], %s878
      %s881 = sshll.u32 [#allocation8], 4
      %s882 = int_to_ptr.vmem [resolvable:$true] %s881
      %884 = dma.vmem_to_hbm [thread:$0]  %s882, 256, %s3, [#allocation4]
    $region29: #{tpu_custom_call.1} parent=1 // pred_fallthru
      _
    // Predicated region
    $region30: #{tpu_custom_call.1} parent=1 // pred_check
      _
    $region31: #{tpu_custom_call.1} parent=1 // pred_check_branch
      %886 = sbr.rel (0) target = $region33
    $region32: #{tpu_custom_call.1} parent=1 // pred_region
      %887 = dma.done [#allocation4], 256
    $region33: #{tpu_custom_call.1} parent=1 // pred_fallthru
      _
    %888 = vsyncpa [#allocation3], 1
    %889 = vsyncpa [#allocation6], 1
    %890 = vsyncpa [#allocation4], 1

</llo_original>
